<compile_context>
chip_gen: v7x
topology: tpu7x:2x2x1
jax: 0.10.0
libtpu: 0.0.40
codegen_flags: <defaults>
</compile_context>

<pallas_src>
import functools

import jax
import jax.numpy as jnp
from jax import lax
from jax.experimental import pallas as pl
from jax.experimental.pallas import tpu as pltpu

LANES = 128


# ----------------------------------------------------------------------------
# Fused focal-loss reduction kernel: one (block_rows, 128) row tile per step.
# Grid = (core_split, row_blocks_per_core); outputs are per-core per-lane
# partial sums, combined (cheaply) in the wrapper.
# ----------------------------------------------------------------------------
def _focal_loss_kernel(x_ref, t_ref, o_f_ref, *o_a_refs, gamma, alpha,
                       n_valid, block_rows, blocks_per_core):
    o_a_ref = o_a_refs[0] if o_a_refs else None
    c = pl.program_id(0)          # core-parallel split index
    k = pl.program_id(1)          # row-block index within this core's slice

    @pl.when(k == 0)
    def _init():
        o_f_ref[...] = jnp.zeros_like(o_f_ref)
        if o_a_ref is not None:
            o_a_ref[...] = jnp.zeros_like(o_a_ref)

    # Unclamped global row-block index (the index_map clamps the DMA; any
    # phantom/ragged part is zeroed by the mask below, so data is irrelevant).
    blk = c * blocks_per_core + k

    x = x_ref[...].astype(jnp.float32)            # (block_rows, 128)
    t = t_ref[...].astype(jnp.float32)            # (block_rows, 128), 0/1

    def accumulate(mask):
        # Binary targets: pt = sigmoid(x*(2t-1))  =>  2 transcendentals/elem.
        # TODO(synk): for non-binary ("soft") float targets the original
        #             1-|sigmoid(x)-t| formula differs; binary assumed here.
        z = x * (2.0 * t - 1.0)
        e = jnp.exp(-z)                           # EUP
        logpt = -jnp.log(1.0 + e)                 # EUP  (no -inf on saturation)
        if gamma == 0:
            focal = -logpt                        # = log(1+e) >= 0
        else:
            w = e * pl.reciprocal(1.0 + e, approx=True)   # 1 - pt, EUP-cheap
            if float(gamma).is_integer() and 0 < gamma <= 4:
                p = w
                for _ in range(int(gamma) - 1):
                    p = p * w                     # exact repeated multiply
            else:
                p = jnp.power(w, jnp.float32(gamma))
            focal = -p * logpt
        if mask is not None:
            focal = jnp.where(mask, focal, 0.0)
        # Per-lane partial sums only; cross-lane reduce deferred to wrapper.
        o_f_ref[...] += jnp.sum(focal, axis=0, keepdims=True)     # (1, 128)

        if alpha is not None:
            a0, a1 = alpha
            # TODO(synk): alpha[target] gather approximated by a binary select;
            #             longer alpha lists / non-binary targets not gathered.
            at = jnp.where(t > 0.5, jnp.float32(a1), jnp.float32(a0))
            if mask is not None:
                at = jnp.where(mask, at, 0.0)
            o_a_ref[...] += jnp.sum(at, axis=0, keepdims=True)    # (1, 128)

    # Blocks whose every element is valid take the mask-free fast path.
    full_blocks = n_valid // (block_rows * LANES)
    full_rows = n_valid // LANES
    rem_lanes = n_valid % LANES

    @pl.when(blk < full_blocks)
    def _full():
        accumulate(None)

    @pl.when(blk >= full_blocks)
    def _ragged():
        row = lax.broadcasted_iota(jnp.int32, x.shape, 0)
        lane = lax.broadcasted_iota(jnp.int32, x.shape, 1)
        grow = blk * block_rows + row             # global row; int32-safe
        valid = grow < full_rows
        if rem_lanes:
            valid = valid | ((grow == full_rows) & (lane < rem_lanes))
        accumulate(valid)


def _alpha_pair(alpha):
    if alpha is None:
        return None
    if isinstance(alpha, (float, int)):
        return (float(alpha), 1.0 - float(alpha))
    a = list(alpha)
    return (float(a[0]), float(a[1]))


# ----------------------------------------------------------------------------
# Wrapper: mirrors FocalLoss.forward (view / broadcast / reduce semantics).
# ----------------------------------------------------------------------------
def focal_loss(logits, targets, gamma=0.0, alpha=None, size_average=True,
               max_block_rows=2048, num_core_splits=2):
    # max_block_rows must be sublane-tile friendly for f32/bf16/int8 inputs.
    max_block_rows = max(32, (max_block_rows // 32) * 32)

    x = logits
    if x.ndim > 2:
        x = x.reshape(-1, 1)                       # input.view(-1, 1)
    t = targets.reshape(-1, 1)                     # target.view(-1, 1)

    # Elementwise broadcast of (pt - target), as in the torch code.
    shp = jnp.broadcast_shapes(x.shape, t.shape)
    if x.shape != shp:
        x = jnp.broadcast_to(x, shp)
    if t.shape != shp:
        t = jnp.broadcast_to(t, shp)
    xf = x.reshape(-1)                             # native dtype, no upcast
    tf = t.reshape(-1)
    n = xf.shape[0]

    # Lane-dense layout (rows, 128); pad at most the <128-element remainder
    # (plus up to 7 rows so rows >= 8).  Common case (n % 128 == 0, n >= 1024):
    # zero extra copies.
    rows = max(pl.cdiv(n, LANES), 8)
    padded_n = rows * LANES
    if padded_n != n:
        xf = jnp.pad(xf, (0, padded_n - n))
        tf = jnp.pad(tf, (0, padded_n - n))
    x2 = xf.reshape(rows, LANES)
    t2 = tf.reshape(rows, LANES)

    block_rows = rows if rows <= max_block_rows else max_block_rows
    num_blocks = pl.cdiv(rows, block_rows)
    split = num_core_splits if num_blocks >= num_core_splits else 1
    bpc = pl.cdiv(num_blocks, split)               # row blocks per core

    # Clamp so phantom tail blocks still DMA an in-range tile (mask zeroes it).
    def in_map(c, k):
        return (jnp.minimum(c * bpc + k, num_blocks - 1), 0)

    def out_map(c, k):
        return (c, 0)

    out_shapes = [jax.ShapeDtypeStruct((split, LANES), jnp.float32)]
    out_specs = [pl.BlockSpec((1, LANES), out_map)]
    if alpha is not None:
        out_shapes.append(jax.ShapeDtypeStruct((split, LANES), jnp.float32))
        out_specs.append(pl.BlockSpec((1, LANES), out_map))

    single_out = len(out_shapes) == 1
    outs = pl.pallas_call(
        functools.partial(_focal_loss_kernel,
                          gamma=float(gamma),
                          alpha=_alpha_pair(alpha),
                          n_valid=n,
                          block_rows=block_rows,
                          blocks_per_core=bpc),
        out_shape=out_shapes[0] if single_out else tuple(out_shapes),
        grid=(split, bpc),
        in_specs=[pl.BlockSpec((block_rows, LANES), in_map),
                  pl.BlockSpec((block_rows, LANES), in_map)],
        out_specs=out_specs[0] if single_out else tuple(out_specs),
        compiler_params=pltpu.CompilerParams(
            dimension_semantics=("parallel", "arbitrary")),
    )(x2, t2)

    # Tiny cross-core / cross-lane combine + normalization (operates on at
    # most 2 x (2,128) f32 slabs).
    if alpha is not None:
        out_f, out_a = outs
        total = jnp.sum(out_f) * jnp.sum(out_a)    # sum over (M,M) broadcast
        denom = float(n) * float(n)
    else:
        total = jnp.sum(outs)
        denom = float(n)
    if size_average:
        total = total / denom
    return total


# ----------------------------------------------------------------------------
# Pure-JAX reference: literal translation of the PyTorch forward
# (including the (M,1)*(M,) -> (M,M) broadcast when alpha is set).
# ----------------------------------------------------------------------------
def focal_loss_ref(logits, targets, gamma=0.0, alpha=None, size_average=True):
    x = logits
    if x.ndim > 2:
        x = x.reshape(-1, 1)
    x = x.astype(jnp.float32)
    t = targets.reshape(-1, 1).astype(jnp.float32)
    pt = jax.nn.sigmoid(x)
    pt = 1.0 - jnp.abs(pt - t)
    logpt = jnp.log(pt)
    if alpha is not None:
        if isinstance(alpha, (float, int)):
            a = jnp.array([alpha, 1.0 - alpha], jnp.float32)
        else:
            a = jnp.asarray(alpha, jnp.float32)
        at = a[targets.reshape(-1).astype(jnp.int32)]
        logpt = logpt * at                         # (M,1)*(M,) -> (M,M)
    loss = -1.0 * (1.0 - pt) ** gamma * logpt
    return jnp.mean(loss) if size_average else jnp.sum(loss)


if __name__ == "__main__":
    key = jax.random.PRNGKey(0)
    kx, kt, kx2, kt2 = jax.random.split(key, 4)

    # Primary shapes consistent with the module (B=2, C=4, 16x16 spatial).
    shape = (2, 4, 16, 16)
    logits = 2.0 * jax.random.normal(kx, shape, jnp.float32)
    targets = (jax.random.uniform(kt, shape) > 0.5).astype(jnp.float32)

    configs = [
        dict(gamma=0.0, alpha=None, size_average=True),      # module defaults
        dict(gamma=2.0, alpha=0.25, size_average=True),
        dict(gamma=2.0, alpha=[0.3, 0.7], size_average=False),
    ]
    # rtol tolerant of the intentional approx-reciprocal / summation-order
    # differences vs the literal reference.
    for cfg in configs:
        got = jax.block_until_ready(focal_loss(logits, targets, **cfg))
        want = jax.block_until_ready(focal_loss_ref(logits, targets, **cfg))
        assert bool(jnp.isfinite(got)), cfg
        assert jnp.allclose(got, want, rtol=5e-3, atol=1e-5), \
            (cfg, float(got), float(want))

    # Ragged / multi-block / core-split path: n = 2*4*33*17 = 4488 elements,
    # small block_rows to force several row blocks + a phantom tail block.
    shape2 = (2, 4, 33, 17)
    logits2 = 2.0 * jax.random.normal(kx2, shape2, jnp.float32)
    targets2 = (jax.random.uniform(kt2, shape2) > 0.5).astype(jnp.float32)
    cfg2 = dict(gamma=2.0, alpha=0.25, size_average=True)
    got2 = jax.block_until_ready(
        focal_loss(logits2, targets2, max_block_rows=32, **cfg2))
    want2 = jax.block_until_ready(focal_loss_ref(logits2, targets2, **cfg2))
    assert bool(jnp.isfinite(got2)), cfg2
    assert jnp.allclose(got2, want2, rtol=5e-3, atol=1e-5), \
        (cfg2, float(got2), float(want2))

    print("KERNEL_OK")
</pallas_src>

<mosaic_0001>
module attributes {stable_mosaic.version = 11 : i64} {
  func.func @_focal_loss_kernel(%arg0: i32, %arg1: i32, %arg2: memref<16x128xf32, #tpu.memory_space<vmem>>, %arg3: memref<16x128xf32, #tpu.memory_space<vmem>>, %arg4: memref<1x128xf32, #tpu.memory_space<vmem>>) attributes {dimension_semantics = [#tpu.dimension_semantics<parallel>, #tpu.dimension_semantics<arbitrary>], iteration_bounds = array<i64: 1, 1>, scalar_prefetch = 0 : i64, scratch_operands = 0 : i64, tpu.core_type = #tpu.core_type<tc>, window_params = [{transform_indices = @transform_0, window_bounds = array<i64: 16, 128>}, {transform_indices = @transform_1, window_bounds = array<i64: 16, 128>}, {transform_indices = @transform_2, window_bounds = array<i64: 1, 128>}]} {
    %c0_i32 = arith.constant 0 : i32
    %0 = arith.cmpi eq, %arg1, %c0_i32 : i32
    %1 = arith.extui %0 : i1 to i32
    %c0_i32_0 = arith.constant 0 : i32
    %2 = arith.cmpi ne, %1, %c0_i32_0 : i32
    scf.if %2 {
      %cst = arith.constant 0.000000e+00 : f32
      %13 = vector.broadcast %cst : f32 to vector<1x128xf32>
      %c0_8 = arith.constant 0 : index
      %c0_9 = arith.constant 0 : index
      %14 = vector.load %arg4[%c0_8, %c0_9] : memref<1x128xf32, #tpu.memory_space<vmem>>, vector<1x128xf32>
      tpu.vector_store %arg4[%c0_8, %c0_9], %13 {strides = array<i32>} : memref<1x128xf32, #tpu.memory_space<vmem>>, vector<1x128xf32>,
    } else {
    }
    %c1_i32 = arith.constant 1 : i32
    %3 = arith.muli %arg0, %c1_i32 : i32
    %4 = arith.addi %3, %arg1 : i32
    %c0 = arith.constant 0 : index
    %c0_1 = arith.constant 0 : index
    %5 = vector.load %arg2[%c0, %c0_1] : memref<16x128xf32, #tpu.memory_space<vmem>>, vector<16x128xf32>
    %c0_2 = arith.constant 0 : index
    %c0_3 = arith.constant 0 : index
    %6 = vector.load %arg3[%c0_2, %c0_3] : memref<16x128xf32, #tpu.memory_space<vmem>>, vector<16x128xf32>
    %c1_i32_4 = arith.constant 1 : i32
    %7 = arith.cmpi slt, %4, %c1_i32_4 : i32
    %8 = arith.extui %7 : i1 to i32
    %c0_i32_5 = arith.constant 0 : i32
    %9 = arith.cmpi ne, %8, %c0_i32_5 : i32
    scf.if %9 {
      %cst = arith.constant 2.000000e+00 : f32
      %13 = vector.broadcast %cst : f32 to vector<16x128xf32>
      %14 = arith.mulf %13, %6 : vector<16x128xf32>
      %cst_8 = arith.constant 1.000000e+00 : f32
      %15 = vector.broadcast %cst_8 : f32 to vector<16x128xf32>
      %16 = arith.subf %14, %15 : vector<16x128xf32>
      %17 = arith.mulf %5, %16 : vector<16x128xf32>
      %cst_9 = arith.constant 0.000000e+00 : f32
      %18 = vector.broadcast %cst_9 : f32 to vector<16x128xf32>
      %19 = arith.subf %18, %17 : vector<16x128xf32>
      %20 = math.exp %19 : vector<16x128xf32>
      %cst_10 = arith.constant 1.000000e+00 : f32
      %21 = vector.broadcast %cst_10 : f32 to vector<16x128xf32>
      %22 = arith.addf %21, %20 : vector<16x128xf32>
      %23 = math.log %22 : vector<16x128xf32>
      %cst_11 = arith.constant 0.000000e+00 : f32
      %24 = vector.broadcast %cst_11 : f32 to vector<16x128xf32>
      %25 = arith.subf %24, %23 : vector<16x128xf32>
      %cst_12 = arith.constant 0.000000e+00 : f32
      %26 = vector.broadcast %cst_12 : f32 to vector<16x128xf32>
      %27 = arith.subf %26, %25 : vector<16x128xf32>
      %c0_13 = arith.constant 0 : index
      %c0_14 = arith.constant 0 : index
      %28 = vector.load %arg4[%c0_13, %c0_14] : memref<1x128xf32, #tpu.memory_space<vmem>>, vector<1x128xf32>
      %cst_15 = arith.constant dense<0.000000e+00> : vector<128xf32>
      %29 = vector.multi_reduction <add>, %27, %cst_15 [0] : vector<16x128xf32> to vector<128xf32>
      %30 = vector.shape_cast %29 : vector<128xf32> to vector<1x128xf32>
      %31 = arith.addf %28, %30 : vector<1x128xf32>
      %c0_16 = arith.constant 0 : index
      %c0_17 = arith.constant 0 : index
      %32 = vector.load %arg4[%c0_16, %c0_17] : memref<1x128xf32, #tpu.memory_space<vmem>>, vector<1x128xf32>
      tpu.vector_store %arg4[%c0_16, %c0_17], %31 {strides = array<i32>} : memref<1x128xf32, #tpu.memory_space<vmem>>, vector<1x128xf32>,
    } else {
    }
    %c1_i32_6 = arith.constant 1 : i32
    %10 = arith.cmpi sge, %4, %c1_i32_6 : i32
    %11 = arith.extui %10 : i1 to i32
    %c0_i32_7 = arith.constant 0 : i32
    %12 = arith.cmpi ne, %11, %c0_i32_7 : i32
    scf.if %12 {
      %13 = tpu.iota {dimensions = array<i32: 0>} : vector<16x128xi32>
      %c16_i32 = arith.constant 16 : i32
      %14 = arith.muli %4, %c16_i32 : i32
      %15 = vector.broadcast %14 : i32 to vector<16x128xi32>
      %16 = arith.addi %15, %13 : vector<16x128xi32>
      %c16_i32_8 = arith.constant 16 : i32
      %17 = vector.broadcast %c16_i32_8 : i32 to vector<16x128xi32>
      %18 = arith.cmpi slt, %16, %17 : vector<16x128xi32>
      %cst = arith.constant 2.000000e+00 : f32
      %19 = vector.broadcast %cst : f32 to vector<16x128xf32>
      %20 = arith.mulf %19, %6 : vector<16x128xf32>
      %cst_9 = arith.constant 1.000000e+00 : f32
      %21 = vector.broadcast %cst_9 : f32 to vector<16x128xf32>
      %22 = arith.subf %20, %21 : vector<16x128xf32>
      %23 = arith.mulf %5, %22 : vector<16x128xf32>
      %cst_10 = arith.constant 0.000000e+00 : f32
      %24 = vector.broadcast %cst_10 : f32 to vector<16x128xf32>
      %25 = arith.subf %24, %23 : vector<16x128xf32>
      %26 = math.exp %25 : vector<16x128xf32>
      %cst_11 = arith.constant 1.000000e+00 : f32
      %27 = vector.broadcast %cst_11 : f32 to vector<16x128xf32>
      %28 = arith.addf %27, %26 : vector<16x128xf32>
      %29 = math.log %28 : vector<16x128xf32>
      %cst_12 = arith.constant 0.000000e+00 : f32
      %30 = vector.broadcast %cst_12 : f32 to vector<16x128xf32>
      %31 = arith.subf %30, %29 : vector<16x128xf32>
      %cst_13 = arith.constant 0.000000e+00 : f32
      %32 = vector.broadcast %cst_13 : f32 to vector<16x128xf32>
      %33 = arith.subf %32, %31 : vector<16x128xf32>
      %cst_14 = arith.constant 0.000000e+00 : f32
      %34 = vector.broadcast %cst_14 : f32 to vector<16x128xf32>
      %35 = arith.select %18, %33, %34 : vector<16x128xi1>, vector<16x128xf32>
      %c0_15 = arith.constant 0 : index
      %c0_16 = arith.constant 0 : index
      %36 = vector.load %arg4[%c0_15, %c0_16] : memref<1x128xf32, #tpu.memory_space<vmem>>, vector<1x128xf32>
      %cst_17 = arith.constant dense<0.000000e+00> : vector<128xf32>
      %37 = vector.multi_reduction <add>, %35, %cst_17 [0] : vector<16x128xf32> to vector<128xf32>
      %38 = vector.shape_cast %37 : vector<128xf32> to vector<1x128xf32>
      %39 = arith.addf %36, %38 : vector<1x128xf32>
      %c0_18 = arith.constant 0 : index
      %c0_19 = arith.constant 0 : index
      %40 = vector.load %arg4[%c0_18, %c0_19] : memref<1x128xf32, #tpu.memory_space<vmem>>, vector<1x128xf32>
      tpu.vector_store %arg4[%c0_18, %c0_19], %39 {strides = array<i32>} : memref<1x128xf32, #tpu.memory_space<vmem>>, vector<1x128xf32>,
    } else {
    }
    return
  }
  func.func @transform_0(%arg0: i32, %arg1: i32) -> (i32, i32) {
    %c1_i32 = arith.constant 1 : i32
    %0 = arith.muli %arg0, %c1_i32 : i32
    %1 = arith.addi %0, %arg1 : i32
    %c0_i32 = arith.constant 0 : i32
    %2 = arith.minsi %1, %c0_i32 : i32
    %c0_i32_0 = arith.constant 0 : i32
    %c0_i32_1 = arith.constant 0 : i32
    return %2, %c0_i32_0 : i32, i32
  }
  func.func @transform_1(%arg0: i32, %arg1: i32) -> (i32, i32) {
    %c1_i32 = arith.constant 1 : i32
    %0 = arith.muli %arg0, %c1_i32 : i32
    %1 = arith.addi %0, %arg1 : i32
    %c0_i32 = arith.constant 0 : i32
    %2 = arith.minsi %1, %c0_i32 : i32
    %c0_i32_0 = arith.constant 0 : i32
    %c0_i32_1 = arith.constant 0 : i32
    return %2, %c0_i32_0 : i32, i32
  }
  func.func @transform_2(%arg0: i32, %arg1: i32) -> (i32, i32) {
    %c0_i32 = arith.constant 0 : i32
    %c0_i32_0 = arith.constant 0 : i32
    return %arg0, %c0_i32 : i32, i32
  }
}

</mosaic_0001>

<llo_original>
// kernel: tpu_custom_call.1
$region0: #{tpu_custom_call.1}
  #allocation0 [shape = 'u32[]', space=smem, size = 0x4, offset = 0x4, fixed_abs, tag = 'smem constant byte address 0x4 - core index']
  #allocation1 [shape = 'u32[144,128]{1,0:T(1,128)}', space=vmem, size = 0x12000, scoped, tag = 'internal scratch']
  %s0 = inlined_call_operand.hbm [shape: f32[16,128], index: 0, kind: input, shape index: {}]
  %s1 = inlined_call_operand.hbm [shape: f32[16,128], index: 1, kind: input, shape index: {}]
  %s2 = inlined_call_operand.hbm [shape: f32[1,128], index: 2, kind: output, shape index: {}]
  %s3 = sld [smem:[#allocation0]]
  $region38: #{tpu_custom_call.1} parent=0
    _
  %s5 = ssub.s32 1, %s3
  %s6 = scalar_select 0, %s5, %s3
  $region1: #{tpu_custom_call.1} parent=0
    #allocation2 [shape = 'u8[8192]{0}', space=vmem, size = 0x2000, scoped, tag = 'input window, operand 0, single buffered']
    #allocation3 [shape = 's32[1]{0}', space=sflag, size = 0x4, scoped, tag = 'scoped memory for tpu_custom_call.1']
    #allocation4 [shape = 's32[1]{0}', space=sflag, size = 0x4, scoped, tag = 'scoped memory for tpu_custom_call.1']
    #allocation5 [shape = 'u8[8192]{0}', space=vmem, size = 0x2000, scoped, tag = 'input window, operand 1, single buffered']
    #allocation6 [shape = 's32[1]{0}', space=sflag, size = 0x4, scoped, tag = 'scoped memory for tpu_custom_call.1']
    #allocation7 [shape = 'u8[512]{0}', space=vmem, size = 0x400, scoped, tag = 'output window, operand 0, single buffered']
    %7 = vsyncpa [#allocation3], 0
    %8 = vsyncpa [#allocation6], 0
    %9 = vsyncpa [#allocation4], 0
    // Predicated region
    $region2: #{tpu_custom_call.1} parent=1 // pred_check
      _
    $region3: #{tpu_custom_call.1} parent=1 // pred_check_branch
      %11 = sbr.rel (0) target = $region5
    $region4: #{tpu_custom_call.1} parent=1 // pred_region
      %s12 = sadd.s32 0, 0
      %p13 = scmp.lt.s32.totalorder %s12, 0
      %s14 = scalar_select %p13, %s12, 0
      %s15 = smul.u32 2, %s14
      %s17 = ssub.s32 256, 256
      %18 = vsyncadd [#allocation3], %s17
      %s19 = smul.addr %s15, 128
      %s20 = scalar_lea.hbm %s0, %s19
      %s21 = sshll.u32 [#allocation2], 4
      %s22 = int_to_ptr.vmem [resolvable:$true] %s21
      %27 = dma.hbm_to_vmem [thread:$0]  %s20, 256, %s22, [#allocation3], 128, 128, 8
    $region5: #{tpu_custom_call.1} parent=1 // pred_fallthru
      _
    // Predicated region
    $region6: #{tpu_custom_call.1} parent=1 // pred_check
      _
    $region7: #{tpu_custom_call.1} parent=1 // pred_check_branch
      %29 = sbr.rel (0) target = $region9
    $region8: #{tpu_custom_call.1} parent=1 // pred_region
      %s30 = sadd.s32 0, 0
      %p31 = scmp.lt.s32.totalorder %s30, 0
      %s32 = scalar_select %p31, %s30, 0
      %s33 = smul.u32 2, %s32
      %s35 = ssub.s32 256, 256
      %36 = vsyncadd [#allocation6], %s35
      %s37 = smul.addr %s33, 128
      %s38 = scalar_lea.hbm %s1, %s37
      %s39 = sshll.u32 [#allocation5], 4
      %s40 = int_to_ptr.vmem [resolvable:$true] %s39
      %45 = dma.hbm_to_vmem [thread:$0]  %s38, 256, %s40, [#allocation6], 128, 128, 8
    $region9: #{tpu_custom_call.1} parent=1 // pred_fallthru
      _
    // Predicated region
    $region10: #{tpu_custom_call.1} parent=1 // pred_check
      _
    $region11: #{tpu_custom_call.1} parent=1 // pred_check_branch
      %47 = sbr.rel (0) target = $region13
    $region12: #{tpu_custom_call.1} parent=1 // pred_region
      %48 = dma.done [#allocation3], 256
    $region13: #{tpu_custom_call.1} parent=1 // pred_fallthru
      _
    // Predicated region
    $region14: #{tpu_custom_call.1} parent=1 // pred_check
      _
    $region15: #{tpu_custom_call.1} parent=1 // pred_check_branch
      %50 = sbr.rel (0) target = $region17
    $region16: #{tpu_custom_call.1} parent=1 // pred_region
      %51 = dma.done [#allocation6], 256
    $region17: #{tpu_custom_call.1} parent=1 // pred_fallthru
      _
    %s52 = sadd.s32 0, 0
    %p53 = scmp.lt.s32.totalorder %s52, 0
    %s54 = scalar_select %p53, %s52, 0
    %s55 = smul.u32 2, %s54
    %s56 = sadd.s32 0, 0
    %p57 = scmp.lt.s32.totalorder %s56, 0
    %s58 = scalar_select %p57, %s56, 0
    %s59 = smul.u32 2, %s58
    %p60 = scmp.eq.s32.totalorder 0, 0
    // Predicated region
    $region18: #{tpu_custom_call.1} parent=1 // pred_check
      %p61 = pneg %p60
    $region19: #{tpu_custom_call.1} parent=1 // pred_check_branch
      %63 = sbr.rel (%p61) target = $region21
    $region20: #{tpu_custom_call.1} parent=1 // pred_region
      %64 = vst [vmem:[#allocation7] sm:$0x1] 0.0
    $region21: #{tpu_custom_call.1} parent=1 // pred_fallthru
      _
    %s65 = sadd.s32 0, 0
    %v66 = vld [vmem:[#allocation2] sm:$0xff]
    %v67 = vld [vmem:[#allocation2 + $0x8] sm:$0xff]
    %v68 = vld [vmem:[#allocation5] sm:$0xff]
    %v69 = vld [vmem:[#allocation5 + $0x8] sm:$0xff]
    %p70 = scmp.lt.s32.totalorder %s65, 1
    // Predicated region
    $region22: #{tpu_custom_call.1} parent=1 // pred_check
      %p71 = pneg %p70
    $region23: #{tpu_custom_call.1} parent=1 // pred_check_branch
      %73 = sbr.rel (%p71) target = $region25
    $region24: #{tpu_custom_call.1} parent=1 // pred_region
      %v74 = vmul.f32 %v68, 2.0
      %v75 = vmul.f32 %v69, 2.0
      %v76 = vsub.f32 %v74, 1.0
      %v77 = vsub.f32 %v75, 1.0
      %v78 = vmul.f32 %v66, %v76
      %v79 = vmul.f32 %v67, %v77
      %v80 = vsub.f32 0.0, %v78
      %v81 = vsub.f32 0.0, %v79
      %v82 = vmul.f32 %v80, 1.442695
      %v83 = vpow.pop %v82
      %v84 = vmul.f32 %v81, 1.442695
      %v85 = vpow.pop %v84
      %v86 = vadd.f32 %v83, 1.0
      %v87 = vadd.f32 %v85, 1.0
      %v88 = vlog2.pop %v86
      %v89 = vmul.f32 %v88, 0.6931472
      %v90 = vlog2.pop %v87
      %v91 = vmul.f32 %v90, 0.6931472
      %v92 = vsub.f32 0.0, %v89
      %v93 = vsub.f32 0.0, %v91
      %v94 = vsub.f32 0.0, %v92
      %v95 = vsub.f32 0.0, %v93
      %v96 = vld [vmem:[#allocation7] sm:$0x1]
      %v97 = vadd.f32 %v94, %v95
      %v98 = vrot.slane %v97, 4
      %v99 = vadd.f32 %v97, %v98
      %v100 = vrot.slane %v99, 2
      %v101 = vadd.f32 %v99, %v100
      %v102 = vrot.slane %v101, 1
      %v103 = vadd.f32 %v101, %v102
      %v104 = vadd.f32 %v96, %v103
      %105 = vst [vmem:[#allocation7] sm:$0x1] %v104
    $region25: #{tpu_custom_call.1} parent=1 // pred_fallthru
      _
    %p106 = scmp.ge.s32.totalorder %s65, 1
    // Predicated region
    $region26: #{tpu_custom_call.1} parent=1 // pred_check
      %p107 = pneg %p106
    $region27: #{tpu_custom_call.1} parent=1 // pred_check_branch
      %109 = sbr.rel (%p107) target = $region29
    $region28: #{tpu_custom_call.1} parent=1 // pred_region
      %v110 = vlaneseq
      %v111 = vshrl.u32 %v110, 7
      %v112 = vadd.s32 %v111, 8
      %s113 = smul.u32 %s65, 16
      %v114 = vstv %s113
      %v115 = vadd.s32 %v114, %v111
      %v116 = vadd.s32 %v114, %v112
      %vm117 = vcmp.lt.s32.totalorder %v115, 16
      %vm118 = vcmp.lt.s32.totalorder %v116, 16
      %v119 = vmul.f32 %v68, 2.0
      %v120 = vmul.f32 %v69, 2.0
      %v121 = vsub.f32 %v119, 1.0
      %v122 = vsub.f32 %v120, 1.0
      %v123 = vmul.f32 %v66, %v121
      %v124 = vmul.f32 %v67, %v122
      %v125 = vsub.f32 0.0, %v123
      %v126 = vsub.f32 0.0, %v124
      %v127 = vmul.f32 %v125, 1.442695
      %v128 = vpow.pop %v127
      %v129 = vmul.f32 %v126, 1.442695
      %v130 = vpow.pop %v129
      %v131 = vadd.f32 %v128, 1.0
      %v132 = vadd.f32 %v130, 1.0
      %v133 = vlog2.pop %v131
      %v134 = vmul.f32 %v133, 0.6931472
      %v135 = vlog2.pop %v132
      %v136 = vmul.f32 %v135, 0.6931472
      %v137 = vsub.f32 0.0, %v134
      %v138 = vsub.f32 0.0, %v136
      %v139 = vsub.f32 0.0, %v137
      %v140 = vsub.f32 0.0, %v138
      %v141 = vsel %vm117, %v139, 0.0
      %v142 = vsel %vm118, %v140, 0.0
      %v143 = vld [vmem:[#allocation7] sm:$0x1]
      %v144 = vadd.f32 %v141, %v142
      %v145 = vrot.slane %v144, 4
      %v146 = vadd.f32 %v144, %v145
      %v147 = vrot.slane %v146, 2
      %v148 = vadd.f32 %v146, %v147
      %v149 = vrot.slane %v148, 1
      %v150 = vadd.f32 %v148, %v149
      %v151 = vadd.f32 %v143, %v150
      %152 = vst [vmem:[#allocation7] sm:$0x1] %v151
    $region29: #{tpu_custom_call.1} parent=1 // pred_fallthru
      _
    // Predicated region
    $region30: #{tpu_custom_call.1} parent=1 // pred_check
      _
    $region31: #{tpu_custom_call.1} parent=1 // pred_check_branch
      %154 = sbr.rel (0) target = $region33
    $region32: #{tpu_custom_call.1} parent=1 // pred_region
      %s156 = ssub.s32 16, 16
      %157 = vsyncadd [#allocation4], %s156
      %s159 = sshll.u32 [#allocation7], 4
      %s160 = int_to_ptr.vmem [resolvable:$true] %s159
      %162 = dma.vmem_to_hbm [thread:$0]  %s160, 16, %s2, [#allocation4]
    $region33: #{tpu_custom_call.1} parent=1 // pred_fallthru
      _
    // Predicated region
    $region34: #{tpu_custom_call.1} parent=1 // pred_check
      _
    $region35: #{tpu_custom_call.1} parent=1 // pred_check_branch
      %164 = sbr.rel (0) target = $region37
    $region36: #{tpu_custom_call.1} parent=1 // pred_region
      %165 = dma.done [#allocation4], 16
    $region37: #{tpu_custom_call.1} parent=1 // pred_fallthru
      _
    %166 = vsyncpa [#allocation3], 1
    %167 = vsyncpa [#allocation6], 1
    %168 = vsyncpa [#allocation4], 1

</llo_original>
